<compile_context>
chip_gen: v6e
topology: v6e:2x2x1
jax: 0.10.0
libtpu: 0.0.40
codegen_flags: <defaults>
</compile_context>

<pallas_src>
import functools

import jax
import jax.numpy as jnp
from jax.experimental import pallas as pl
from jax.experimental.pallas import tpu as pltpu


def _round_up(x, m):
    return ((x + m - 1) // m) * m


def _scm_kernel(alpha_ref, patches_ref, w1_ref, w2_ref, x0_ref, out_ref):
    # conv3x3 / stride3 as one lane-dense matmul on block-diagonal weights (MXU).
    h = jnp.dot(patches_ref[...], w1_ref[...], preferred_element_type=jnp.float32)
    # PReLU with a single shared slope (PyTorch default: num_parameters=1).
    a = alpha_ref[0]
    h = jnp.where(h > 0, h, a * h)
    # 1x1 conv as a second lane-dense matmul (MXU).
    z = jnp.dot(h.astype(w2_ref.dtype), w2_ref[...],
                preferred_element_type=jnp.float32)
    # Sigmoid on the EUP.
    att = jax.nn.sigmoid(z)
    # Gate x0 by the attention map (f32 math, cast back on store).
    out_ref[...] = (x0_ref[...].astype(jnp.float32) * att).astype(out_ref.dtype)


@functools.partial(jax.jit, static_argnames=("use_bf16",))
def scm_forward(x0, x1, w1_oihw, w2_oihw, alpha, use_bf16=False):
    """x0: (N, Cout, Ho, Wo), x1: (N, Cin, H, W) — NCHW like PyTorch."""
    N, Cin, H, W = x1.shape
    Ho, Wo = (H - 3) // 3 + 1, (W - 3) // 3 + 1
    Cmid = w1_oihw.shape[0]
    Cout = w2_oihw.shape[0]
    K = Cin * 9
    M = N * Ho * Wo

    # Lane-packing factor: fold G consecutive output positions into the lane
    # axis so every DMA / MXU result / store is >= 128 lanes wide.
    G = 1 if Cout >= 128 else -(-128 // Cout)

    # --- glue (fused by jit with the padding/packing below): im2col for the
    #     non-overlapping kernel=3 / stride=3 / pad=0 conv ---
    x1c = x1[:, :, : Ho * 3, : Wo * 3]
    patches = (
        x1c.reshape(N, Cin, Ho, 3, Wo, 3)
        .transpose(0, 2, 4, 1, 3, 5)          # (N, Ho, Wo, Cin, 3, 3)
        .reshape(M, K)                        # patch features ordered (C, kh, kw)
    )
    # TODO(synk): patch extraction could be folded into the kernel (NHWC input,
    # 3-input-row BlockSpec) to drop one HBM round-trip of `patches`; it is kept
    # in the same jit here so XLA fuses the transpose with the pad/pack copy.
    x0_rows = x0.transpose(0, 2, 3, 1).reshape(M, Cout)

    w1_mat = w1_oihw.reshape(Cmid, K).T       # (K, Cmid)   order matches patches
    w2_mat = w2_oihw.reshape(Cout, Cmid).T    # (Cmid, Cout)
    # Block-diagonal "wide" weights so G positions share one sublane row.
    w1_bd = jnp.kron(jnp.eye(G, dtype=jnp.float32), w1_mat)   # (G*K,    G*Cmid)
    w2_bd = jnp.kron(jnp.eye(G, dtype=jnp.float32), w2_mat)   # (G*Cmid, G*Cout)

    mm_dtype = jnp.bfloat16 if use_bf16 else jnp.float32
    patches = patches.astype(mm_dtype)
    w1_bd = w1_bd.astype(mm_dtype)
    w2_bd = w2_bd.astype(mm_dtype)

    # --- row tiling: large tiles, patch tile capped at ~4 MiB (fits the
    #     scoped-VMEM default on v5e/v6e/v7x with double buffering) ---
    Mw = -(-M // G)                                        # wide rows needed
    bytes_per_wide_row = G * K * patches.dtype.itemsize
    tmw_cap = max(8, min(512, ((4 * 1024 * 1024) // bytes_per_wide_row) // 8 * 8))
    TMw = min(tmw_cap, _round_up(Mw, 8))
    M_pad = _round_up(M, G * TMw)

    if M_pad != M:
        patches = jnp.pad(patches, ((0, M_pad - M), (0, 0)))
        x0_rows = jnp.pad(x0_rows, ((0, M_pad - M), (0, 0)))

    Mw_pad = M_pad // G
    patches_w = patches.reshape(Mw_pad, G * K)      # contiguous -> free reshape
    x0_w = x0_rows.reshape(Mw_pad, G * Cout)

    alpha_arr = jnp.asarray(alpha, dtype=jnp.float32).reshape(1)

    out_w = pl.pallas_call(
        _scm_kernel,
        out_shape=jax.ShapeDtypeStruct((Mw_pad, G * Cout), x0.dtype),
        grid=(Mw_pad // TMw,),
        in_specs=[
            pl.BlockSpec(memory_space=pltpu.SMEM),                  # alpha scalar
            pl.BlockSpec((TMw, G * K), lambda i: (i, 0)),           # patches tile
            pl.BlockSpec((G * K, G * Cmid), lambda i: (0, 0)),      # W1 (resident)
            pl.BlockSpec((G * Cmid, G * Cout), lambda i: (0, 0)),   # W2 (resident)
            pl.BlockSpec((TMw, G * Cout), lambda i: (i, 0)),        # x0 tile
        ],
        out_specs=pl.BlockSpec((TMw, G * Cout), lambda i: (i, 0)),
        compiler_params=pltpu.CompilerParams(dimension_semantics=("parallel",)),
    )(alpha_arr, patches_w, w1_bd, w2_bd, x0_w)

    out = (
        out_w.reshape(M_pad, Cout)[:M]
        .reshape(N, Ho, Wo, Cout)
        .transpose(0, 3, 1, 2)
    )
    return out


def scm_reference(x0, x1, w1_oihw, w2_oihw, alpha):
    """Pure-JAX reference using lax convs (NCHW / OIHW, like PyTorch)."""
    h = jax.lax.conv_general_dilated(
        x1, w1_oihw, window_strides=(3, 3), padding="VALID",
        dimension_numbers=("NCHW", "OIHW", "NCHW"))
    h = jnp.where(h > 0, h, alpha * h)
    z = jax.lax.conv_general_dilated(
        h, w2_oihw, window_strides=(1, 1), padding="VALID",
        dimension_numbers=("NCHW", "OIHW", "NCHW"))
    att = jax.nn.sigmoid(z)
    return x0 * att


if __name__ == "__main__":
    # Module config (zero_init=0 so weights are non-trivial)
    representation_dim = 8
    reduction = 2
    channels_out = 4
    N, H, W = 2, 24, 24
    Cin = representation_dim
    Cmid = representation_dim // reduction
    Cout = channels_out
    Ho, Wo = H // 3, W // 3

    key = jax.random.PRNGKey(0)
    k0, k1, k2, k3 = jax.random.split(key, 4)
    # x is a pair: x[1] feeds the conv stack, x[0] is gated by the attention.
    x1 = jax.random.normal(k0, (N, Cin, H, W), dtype=jnp.float32)
    x0 = jax.random.normal(k1, (N, Cout, Ho, Wo), dtype=jnp.float32)
    # Deterministic synthetic weights (conv layouts match PyTorch OIHW).
    w1 = 0.1 * jax.random.normal(k2, (Cmid, Cin, 3, 3), dtype=jnp.float32)
    w2 = 0.1 * jax.random.normal(k3, (Cout, Cmid, 1, 1), dtype=jnp.float32)
    alpha = 0.25  # PReLU default init

    ref = scm_reference(x0, x1, w1, w2, alpha)

    # f32 path (exact semantics of the PyTorch module).
    out = jax.block_until_ready(scm_forward(x0, x1, w1, w2, alpha))
    assert out.shape == (N, Cout, Ho, Wo)
    assert jnp.allclose(out, ref, atol=1e-5, rtol=1e-5)

    # bf16-matmul path (bandwidth option for v6e/v7x), looser tolerance.
    out_bf16 = jax.block_until_ready(
        scm_forward(x0, x1, w1, w2, alpha, use_bf16=True))
    assert jnp.allclose(out_bf16, ref, atol=3e-2, rtol=3e-2)

    print("KERNEL_OK")
</pallas_src>

<mosaic_0001>
module attributes {stable_mosaic.version = 11 : i64} {
  func.func @_scm_kernel(%arg0: i32, %arg1: memref<1xf32, #tpu.memory_space<smem>>, %arg2: memref<8x2304xf32, #tpu.memory_space<vmem>>, %arg3: memref<2304x128xf32, #tpu.memory_space<vmem>>, %arg4: memref<128x128xf32, #tpu.memory_space<vmem>>, %arg5: memref<8x128xf32, #tpu.memory_space<vmem>>, %arg6: memref<8x128xf32, #tpu.memory_space<vmem>>) attributes {dimension_semantics = [#tpu.dimension_semantics<parallel>], iteration_bounds = array<i64: 1>, scalar_prefetch = 0 : i64, scratch_operands = 0 : i64, tpu.core_type = #tpu.core_type<tc>, window_params = [{transform_indices = @transform_0, window_bounds = array<i64: 1>}, {transform_indices = @transform_1, window_bounds = array<i64: 8, 2304>}, {pipeline_mode = #tpu.pipeline_mode<synchronous>, transform_indices = @transform_2, window_bounds = array<i64: 2304, 128>}, {pipeline_mode = #tpu.pipeline_mode<synchronous>, transform_indices = @transform_3, window_bounds = array<i64: 128, 128>}, {transform_indices = @transform_4, window_bounds = array<i64: 8, 128>}, {transform_indices = @transform_5, window_bounds = array<i64: 8, 128>}]} {
    %c0 = arith.constant 0 : index
    %c0_0 = arith.constant 0 : index
    %0 = vector.load %arg2[%c0, %c0_0] : memref<8x2304xf32, #tpu.memory_space<vmem>>, vector<8x2304xf32>
    %c0_1 = arith.constant 0 : index
    %c0_2 = arith.constant 0 : index
    %1 = vector.load %arg3[%c0_1, %c0_2] : memref<2304x128xf32, #tpu.memory_space<vmem>>, vector<2304x128xf32>
    %cst = arith.constant dense<0.000000e+00> : vector<8x128xf32>
    %2 = tpu.matmul %0, %1, %cst {dimension_numbers = #tpu.dot_dimension_numbers<[1], [0], [0], [1], [0, 0, 1, 1], [], []>} : vector<8x2304xf32>, vector<2304x128xf32>, vector<8x128xf32> -> vector<8x128xf32>
    %c0_3 = arith.constant 0 : index
    %3 = memref.load %arg1[%c0_3] : memref<1xf32, #tpu.memory_space<smem>>
    %cst_4 = arith.constant 0.000000e+00 : f32
    %4 = vector.broadcast %cst_4 : f32 to vector<8x128xf32>
    %5 = arith.cmpf ogt, %2, %4 : vector<8x128xf32>
    %6 = vector.broadcast %3 : f32 to vector<8x128xf32>
    %7 = arith.mulf %6, %2 : vector<8x128xf32>
    %8 = arith.select %5, %2, %7 : vector<8x128xi1>, vector<8x128xf32>
    %c0_5 = arith.constant 0 : index
    %c0_6 = arith.constant 0 : index
    %9 = vector.load %arg4[%c0_5, %c0_6] : memref<128x128xf32, #tpu.memory_space<vmem>>, vector<128x128xf32>
    %cst_7 = arith.constant dense<0.000000e+00> : vector<8x128xf32>
    %10 = tpu.matmul %8, %9, %cst_7 {dimension_numbers = #tpu.dot_dimension_numbers<[1], [0], [0], [1], [0, 0, 1, 1], [], []>} : vector<8x128xf32>, vector<128x128xf32>, vector<8x128xf32> -> vector<8x128xf32>
    %11 = arith.negf %10 : vector<8x128xf32>
    %12 = math.exp %11 : vector<8x128xf32>
    %cst_8 = arith.constant 1.000000e+00 : f32
    %13 = vector.broadcast %cst_8 : f32 to vector<8x128xf32>
    %14 = arith.addf %13, %12 : vector<8x128xf32>
    %15 = arith.divf %13, %14 : vector<8x128xf32>
    %c0_9 = arith.constant 0 : index
    %c0_10 = arith.constant 0 : index
    %16 = vector.load %arg5[%c0_9, %c0_10] : memref<8x128xf32, #tpu.memory_space<vmem>>, vector<8x128xf32>
    %17 = arith.mulf %16, %15 : vector<8x128xf32>
    %c0_11 = arith.constant 0 : index
    %c0_12 = arith.constant 0 : index
    %18 = vector.load %arg6[%c0_11, %c0_12] : memref<8x128xf32, #tpu.memory_space<vmem>>, vector<8x128xf32>
    tpu.vector_store %arg6[%c0_11, %c0_12], %17 {strides = array<i32>} : memref<8x128xf32, #tpu.memory_space<vmem>>, vector<8x128xf32>,
    return
  }
  func.func @transform_0(%arg0: i32) -> i32 {
    %c0_i32 = arith.constant 0 : i32
    %c0_i32_0 = arith.constant 0 : i32
    return %c0_i32 : i32
  }
  func.func @transform_1(%arg0: i32) -> (i32, i32) {
    %c0_i32 = arith.constant 0 : i32
    %c0_i32_0 = arith.constant 0 : i32
    return %arg0, %c0_i32 : i32, i32
  }
  func.func @transform_2(%arg0: i32) -> (i32, i32) {
    %c0_i32 = arith.constant 0 : i32
    %c0_i32_0 = arith.constant 0 : i32
    %c0_i32_1 = arith.constant 0 : i32
    return %c0_i32, %c0_i32_0 : i32, i32
  }
  func.func @transform_3(%arg0: i32) -> (i32, i32) {
    %c0_i32 = arith.constant 0 : i32
    %c0_i32_0 = arith.constant 0 : i32
    %c0_i32_1 = arith.constant 0 : i32
    return %c0_i32, %c0_i32_0 : i32, i32
  }
  func.func @transform_4(%arg0: i32) -> (i32, i32) {
    %c0_i32 = arith.constant 0 : i32
    %c0_i32_0 = arith.constant 0 : i32
    return %arg0, %c0_i32 : i32, i32
  }
  func.func @transform_5(%arg0: i32) -> (i32, i32) {
    %c0_i32 = arith.constant 0 : i32
    %c0_i32_0 = arith.constant 0 : i32
    return %arg0, %c0_i32 : i32, i32
  }
}

</mosaic_0001>

<llo_original>
// kernel: scm_forward.1
$region0: #{scm_forward.1}
  #allocation0 [shape = 'u32[]', space=smem, size = 0x4, offset = 0x4, fixed_abs, tag = 'smem constant byte address 0x4 - core index']
  #allocation1 [shape = 'u32[144,128]{1,0:T(1,128)}', space=vmem, size = 0x12000, scoped, tag = 'internal scratch']
  #allocation2 [shape = 'f32[1]{0:T(128)S(6)}', space=smem, size = 0x200, scoped, tag = 'scoped memory for scm_forward.1']
  %s0 = inlined_call_operand.<no memory space> [shape: f32[1], index: 0, kind: input, shape index: {}]
  %s1 = inlined_call_operand.vmem [shape: f32[8,2304], index: 1, kind: input, shape index: {}]
  %s2 = inlined_call_operand.vmem [shape: f32[2304,128], index: 2, kind: input, shape index: {}]
  %s3 = inlined_call_operand.vmem [shape: f32[128,128], index: 3, kind: input, shape index: {}]
  %s4 = inlined_call_operand.vmem [shape: f32[8,128], index: 4, kind: input, shape index: {}]
  %s5 = inlined_call_operand.vmem [shape: f32[8,128], index: 5, kind: output, shape index: {}]
  %s6 = sld [smem:[#allocation0]]
  $region30: #{scm_forward.1} parent=0
    _
  %s8 = ssub.s32 1, %s6
  %s9 = scalar_select 0, %s8, %s6
  %10 = sst [smem:[#allocation2]] %s0
  // Predicated region
  $region2: #{scm_forward.1} parent=0 // pred_check
    _
  $region3: #{scm_forward.1} parent=0 // pred_check_branch
    %12 = sbr.rel (0) target = $region5
  $region4: #{scm_forward.1} parent=0 // pred_region
    _
  $region5: #{scm_forward.1} parent=0 // pred_fallthru
    _
  // Predicated region
  $region6: #{scm_forward.1} parent=0 // pred_check
    _
  $region7: #{scm_forward.1} parent=0 // pred_check_branch
    %14 = sbr.rel (0) target = $region9
  $region8: #{scm_forward.1} parent=0 // pred_region
    _
  $region9: #{scm_forward.1} parent=0 // pred_fallthru
    _
  // Predicated region
  $region10: #{scm_forward.1} parent=0 // pred_check
    _
  $region11: #{scm_forward.1} parent=0 // pred_check_branch
    %16 = sbr.rel (0) target = $region13
  $region12: #{scm_forward.1} parent=0 // pred_region
    _
  $region13: #{scm_forward.1} parent=0 // pred_fallthru
    _
  // Predicated region
  $region14: #{scm_forward.1} parent=0 // pred_check
    _
  $region15: #{scm_forward.1} parent=0 // pred_check_branch
    %18 = sbr.rel (0) target = $region17
  $region16: #{scm_forward.1} parent=0 // pred_region
    _
  $region17: #{scm_forward.1} parent=0 // pred_fallthru
    _
  // Predicated region
  $region18: #{scm_forward.1} parent=0 // pred_check
    _
  $region19: #{scm_forward.1} parent=0 // pred_check_branch
    %20 = sbr.rel (0) target = $region21
  $region20: #{scm_forward.1} parent=0 // pred_region
    _
  $region21: #{scm_forward.1} parent=0 // pred_fallthru
    _
  %v21 = vld [vmem:[%s1] sm:$0xff]
  %v22 = vld [vmem:[%s1 + $0x8] sm:$0xff]
  %v23 = vld [vmem:[%s1 + $0x10] sm:$0xff]
  %v24 = vld [vmem:[%s1 + $0x18] sm:$0xff]
  %v25 = vld [vmem:[%s1 + $0x20] sm:$0xff]
  %v26 = vld [vmem:[%s1 + $0x28] sm:$0xff]
  %v27 = vld [vmem:[%s1 + $0x30] sm:$0xff]
  %v28 = vld [vmem:[%s1 + $0x38] sm:$0xff]
  %v29 = vld [vmem:[%s1 + $0x40] sm:$0xff]
  %v30 = vld [vmem:[%s1 + $0x48] sm:$0xff]
  %v31 = vld [vmem:[%s1 + $0x50] sm:$0xff]
  %v32 = vld [vmem:[%s1 + $0x58] sm:$0xff]
  %v33 = vld [vmem:[%s1 + $0x60] sm:$0xff]
  %v34 = vld [vmem:[%s1 + $0x68] sm:$0xff]
  %v35 = vld [vmem:[%s1 + $0x70] sm:$0xff]
  %v36 = vld [vmem:[%s1 + $0x78] sm:$0xff]
  %v37 = vld [vmem:[%s1 + $0x80] sm:$0xff]
  %v38 = vld [vmem:[%s1 + $0x88] sm:$0xff]
  %v39 = vld [vmem:[%s2] sm:$0xff]
  %v40 = vld [vmem:[%s2 + $0x8] sm:$0xff]
  %v41 = vld [vmem:[%s2 + $0x10] sm:$0xff]
  %v42 = vld [vmem:[%s2 + $0x18] sm:$0xff]
  %v43 = vld [vmem:[%s2 + $0x20] sm:$0xff]
  %v44 = vld [vmem:[%s2 + $0x28] sm:$0xff]
  %v45 = vld [vmem:[%s2 + $0x30] sm:$0xff]
  %v46 = vld [vmem:[%s2 + $0x38] sm:$0xff]
  %v47 = vld [vmem:[%s2 + $0x40] sm:$0xff]
  %v48 = vld [vmem:[%s2 + $0x48] sm:$0xff]
  %v49 = vld [vmem:[%s2 + $0x50] sm:$0xff]
  %v50 = vld [vmem:[%s2 + $0x58] sm:$0xff]
  %v51 = vld [vmem:[%s2 + $0x60] sm:$0xff]
  %v52 = vld [vmem:[%s2 + $0x68] sm:$0xff]
  %v53 = vld [vmem:[%s2 + $0x70] sm:$0xff]
  %v54 = vld [vmem:[%s2 + $0x78] sm:$0xff]
  %v55 = vld [vmem:[%s2 + $0x80] sm:$0xff]
  %v56 = vld [vmem:[%s2 + $0x88] sm:$0xff]
  %v57 = vld [vmem:[%s2 + $0x90] sm:$0xff]
  %v58 = vld [vmem:[%s2 + $0x98] sm:$0xff]
  %v59 = vld [vmem:[%s2 + $0xa0] sm:$0xff]
  %v60 = vld [vmem:[%s2 + $0xa8] sm:$0xff]
  %v61 = vld [vmem:[%s2 + $0xb0] sm:$0xff]
  %v62 = vld [vmem:[%s2 + $0xb8] sm:$0xff]
  %v63 = vld [vmem:[%s2 + $0xc0] sm:$0xff]
  %v64 = vld [vmem:[%s2 + $0xc8] sm:$0xff]
  %v65 = vld [vmem:[%s2 + $0xd0] sm:$0xff]
  %v66 = vld [vmem:[%s2 + $0xd8] sm:$0xff]
  %v67 = vld [vmem:[%s2 + $0xe0] sm:$0xff]
  %v68 = vld [vmem:[%s2 + $0xe8] sm:$0xff]
  %v69 = vld [vmem:[%s2 + $0xf0] sm:$0xff]
  %v70 = vld [vmem:[%s2 + $0xf8] sm:$0xff]
  %v71 = vld [vmem:[%s2 + $0x100] sm:$0xff]
  %v72 = vld [vmem:[%s2 + $0x108] sm:$0xff]
  %v73 = vld [vmem:[%s2 + $0x110] sm:$0xff]
  %v74 = vld [vmem:[%s2 + $0x118] sm:$0xff]
  %v75 = vld [vmem:[%s2 + $0x120] sm:$0xff]
  %v76 = vld [vmem:[%s2 + $0x128] sm:$0xff]
  %v77 = vld [vmem:[%s2 + $0x130] sm:$0xff]
  %v78 = vld [vmem:[%s2 + $0x138] sm:$0xff]
  %v79 = vld [vmem:[%s2 + $0x140] sm:$0xff]
  %v80 = vld [vmem:[%s2 + $0x148] sm:$0xff]
  %v81 = vld [vmem:[%s2 + $0x150] sm:$0xff]
  %v82 = vld [vmem:[%s2 + $0x158] sm:$0xff]
  %v83 = vld [vmem:[%s2 + $0x160] sm:$0xff]
  %v84 = vld [vmem:[%s2 + $0x168] sm:$0xff]
  %v85 = vld [vmem:[%s2 + $0x170] sm:$0xff]
  %v86 = vld [vmem:[%s2 + $0x178] sm:$0xff]
  %v87 = vld [vmem:[%s2 + $0x180] sm:$0xff]
  %v88 = vld [vmem:[%s2 + $0x188] sm:$0xff]
  %v89 = vld [vmem:[%s2 + $0x190] sm:$0xff]
  %v90 = vld [vmem:[%s2 + $0x198] sm:$0xff]
  %v91 = vld [vmem:[%s2 + $0x1a0] sm:$0xff]
  %v92 = vld [vmem:[%s2 + $0x1a8] sm:$0xff]
  %v93 = vld [vmem:[%s2 + $0x1b0] sm:$0xff]
  %v94 = vld [vmem:[%s2 + $0x1b8] sm:$0xff]
  %v95 = vld [vmem:[%s2 + $0x1c0] sm:$0xff]
  %v96 = vld [vmem:[%s2 + $0x1c8] sm:$0xff]
  %v97 = vld [vmem:[%s2 + $0x1d0] sm:$0xff]
  %v98 = vld [vmem:[%s2 + $0x1d8] sm:$0xff]
  %v99 = vld [vmem:[%s2 + $0x1e0] sm:$0xff]
  %v100 = vld [vmem:[%s2 + $0x1e8] sm:$0xff]
  %v101 = vld [vmem:[%s2 + $0x1f0] sm:$0xff]
  %v102 = vld [vmem:[%s2 + $0x1f8] sm:$0xff]
  %v103 = vld [vmem:[%s2 + $0x200] sm:$0xff]
  %v104 = vld [vmem:[%s2 + $0x208] sm:$0xff]
  %v105 = vld [vmem:[%s2 + $0x210] sm:$0xff]
  %v106 = vld [vmem:[%s2 + $0x218] sm:$0xff]
  %v107 = vld [vmem:[%s2 + $0x220] sm:$0xff]
  %v108 = vld [vmem:[%s2 + $0x228] sm:$0xff]
  %v109 = vld [vmem:[%s2 + $0x230] sm:$0xff]
  %v110 = vld [vmem:[%s2 + $0x238] sm:$0xff]
  %v111 = vld [vmem:[%s2 + $0x240] sm:$0xff]
  %v112 = vld [vmem:[%s2 + $0x248] sm:$0xff]
  %v113 = vld [vmem:[%s2 + $0x250] sm:$0xff]
  %v114 = vld [vmem:[%s2 + $0x258] sm:$0xff]
  %v115 = vld [vmem:[%s2 + $0x260] sm:$0xff]
  %v116 = vld [vmem:[%s2 + $0x268] sm:$0xff]
  %v117 = vld [vmem:[%s2 + $0x270] sm:$0xff]
  %v118 = vld [vmem:[%s2 + $0x278] sm:$0xff]
  %v119 = vld [vmem:[%s2 + $0x280] sm:$0xff]
  %v120 = vld [vmem:[%s2 + $0x288] sm:$0xff]
  %v121 = vld [vmem:[%s2 + $0x290] sm:$0xff]
  %v122 = vld [vmem:[%s2 + $0x298] sm:$0xff]
  %v123 = vld [vmem:[%s2 + $0x2a0] sm:$0xff]
  %v124 = vld [vmem:[%s2 + $0x2a8] sm:$0xff]
  %v125 = vld [vmem:[%s2 + $0x2b0] sm:$0xff]
  %v126 = vld [vmem:[%s2 + $0x2b8] sm:$0xff]
  %v127 = vld [vmem:[%s2 + $0x2c0] sm:$0xff]
  %v128 = vld [vmem:[%s2 + $0x2c8] sm:$0xff]
  %v129 = vld [vmem:[%s2 + $0x2d0] sm:$0xff]
  %v130 = vld [vmem:[%s2 + $0x2d8] sm:$0xff]
  %v131 = vld [vmem:[%s2 + $0x2e0] sm:$0xff]
  %v132 = vld [vmem:[%s2 + $0x2e8] sm:$0xff]
  %v133 = vld [vmem:[%s2 + $0x2f0] sm:$0xff]
  %v134 = vld [vmem:[%s2 + $0x2f8] sm:$0xff]
  %v135 = vld [vmem:[%s2 + $0x300] sm:$0xff]
  %v136 = vld [vmem:[%s2 + $0x308] sm:$0xff]
  %v137 = vld [vmem:[%s2 + $0x310] sm:$0xff]
  %v138 = vld [vmem:[%s2 + $0x318] sm:$0xff]
  %v139 = vld [vmem:[%s2 + $0x320] sm:$0xff]
  %v140 = vld [vmem:[%s2 + $0x328] sm:$0xff]
  %v141 = vld [vmem:[%s2 + $0x330] sm:$0xff]
  %v142 = vld [vmem:[%s2 + $0x338] sm:$0xff]
  %v143 = vld [vmem:[%s2 + $0x340] sm:$0xff]
  %v144 = vld [vmem:[%s2 + $0x348] sm:$0xff]
  %v145 = vld [vmem:[%s2 + $0x350] sm:$0xff]
  %v146 = vld [vmem:[%s2 + $0x358] sm:$0xff]
  %v147 = vld [vmem:[%s2 + $0x360] sm:$0xff]
  %v148 = vld [vmem:[%s2 + $0x368] sm:$0xff]
  %v149 = vld [vmem:[%s2 + $0x370] sm:$0xff]
  %v150 = vld [vmem:[%s2 + $0x378] sm:$0xff]
  %v151 = vld [vmem:[%s2 + $0x380] sm:$0xff]
  %v152 = vld [vmem:[%s2 + $0x388] sm:$0xff]
  %v153 = vld [vmem:[%s2 + $0x390] sm:$0xff]
  %v154 = vld [vmem:[%s2 + $0x398] sm:$0xff]
  %v155 = vld [vmem:[%s2 + $0x3a0] sm:$0xff]
  %v156 = vld [vmem:[%s2 + $0x3a8] sm:$0xff]
  %v157 = vld [vmem:[%s2 + $0x3b0] sm:$0xff]
  %v158 = vld [vmem:[%s2 + $0x3b8] sm:$0xff]
  %v159 = vld [vmem:[%s2 + $0x3c0] sm:$0xff]
  %v160 = vld [vmem:[%s2 + $0x3c8] sm:$0xff]
  %v161 = vld [vmem:[%s2 + $0x3d0] sm:$0xff]
  %v162 = vld [vmem:[%s2 + $0x3d8] sm:$0xff]
  %v163 = vld [vmem:[%s2 + $0x3e0] sm:$0xff]
  %v164 = vld [vmem:[%s2 + $0x3e8] sm:$0xff]
  %v165 = vld [vmem:[%s2 + $0x3f0] sm:$0xff]
  %v166 = vld [vmem:[%s2 + $0x3f8] sm:$0xff]
  %v167 = vld [vmem:[%s2 + $0x400] sm:$0xff]
  %v168 = vld [vmem:[%s2 + $0x408] sm:$0xff]
  %v169 = vld [vmem:[%s2 + $0x410] sm:$0xff]
  %v170 = vld [vmem:[%s2 + $0x418] sm:$0xff]
  %v171 = vld [vmem:[%s2 + $0x420] sm:$0xff]
  %v172 = vld [vmem:[%s2 + $0x428] sm:$0xff]
  %v173 = vld [vmem:[%s2 + $0x430] sm:$0xff]
  %v174 = vld [vmem:[%s2 + $0x438] sm:$0xff]
  %v175 = vld [vmem:[%s2 + $0x440] sm:$0xff]
  %v176 = vld [vmem:[%s2 + $0x448] sm:$0xff]
  %v177 = vld [vmem:[%s2 + $0x450] sm:$0xff]
  %v178 = vld [vmem:[%s2 + $0x458] sm:$0xff]
  %v179 = vld [vmem:[%s2 + $0x460] sm:$0xff]
  %v180 = vld [vmem:[%s2 + $0x468] sm:$0xff]
  %v181 = vld [vmem:[%s2 + $0x470] sm:$0xff]
  %v182 = vld [vmem:[%s2 + $0x478] sm:$0xff]
  %v183 = vld [vmem:[%s2 + $0x480] sm:$0xff]
  %v184 = vld [vmem:[%s2 + $0x488] sm:$0xff]
  %v185 = vld [vmem:[%s2 + $0x490] sm:$0xff]
  %v186 = vld [vmem:[%s2 + $0x498] sm:$0xff]
  %v187 = vld [vmem:[%s2 + $0x4a0] sm:$0xff]
  %v188 = vld [vmem:[%s2 + $0x4a8] sm:$0xff]
  %v189 = vld [vmem:[%s2 + $0x4b0] sm:$0xff]
  %v190 = vld [vmem:[%s2 + $0x4b8] sm:$0xff]
  %v191 = vld [vmem:[%s2 + $0x4c0] sm:$0xff]
  %v192 = vld [vmem:[%s2 + $0x4c8] sm:$0xff]
  %v193 = vld [vmem:[%s2 + $0x4d0] sm:$0xff]
  %v194 = vld [vmem:[%s2 + $0x4d8] sm:$0xff]
  %v195 = vld [vmem:[%s2 + $0x4e0] sm:$0xff]
  %v196 = vld [vmem:[%s2 + $0x4e8] sm:$0xff]
  %v197 = vld [vmem:[%s2 + $0x4f0] sm:$0xff]
  %v198 = vld [vmem:[%s2 + $0x4f8] sm:$0xff]
  %v199 = vld [vmem:[%s2 + $0x500] sm:$0xff]
  %v200 = vld [vmem:[%s2 + $0x508] sm:$0xff]
  %v201 = vld [vmem:[%s2 + $0x510] sm:$0xff]
  %v202 = vld [vmem:[%s2 + $0x518] sm:$0xff]
  %v203 = vld [vmem:[%s2 + $0x520] sm:$0xff]
  %v204 = vld [vmem:[%s2 + $0x528] sm:$0xff]
  %v205 = vld [vmem:[%s2 + $0x530] sm:$0xff]
  %v206 = vld [vmem:[%s2 + $0x538] sm:$0xff]
  %v207 = vld [vmem:[%s2 + $0x540] sm:$0xff]
  %v208 = vld [vmem:[%s2 + $0x548] sm:$0xff]
  %v209 = vld [vmem:[%s2 + $0x550] sm:$0xff]
  %v210 = vld [vmem:[%s2 + $0x558] sm:$0xff]
  %v211 = vld [vmem:[%s2 + $0x560] sm:$0xff]
  %v212 = vld [vmem:[%s2 + $0x568] sm:$0xff]
  %v213 = vld [vmem:[%s2 + $0x570] sm:$0xff]
  %v214 = vld [vmem:[%s2 + $0x578] sm:$0xff]
  %v215 = vld [vmem:[%s2 + $0x580] sm:$0xff]
  %v216 = vld [vmem:[%s2 + $0x588] sm:$0xff]
  %v217 = vld [vmem:[%s2 + $0x590] sm:$0xff]
  %v218 = vld [vmem:[%s2 + $0x598] sm:$0xff]
  %v219 = vld [vmem:[%s2 + $0x5a0] sm:$0xff]
  %v220 = vld [vmem:[%s2 + $0x5a8] sm:$0xff]
  %v221 = vld [vmem:[%s2 + $0x5b0] sm:$0xff]
  %v222 = vld [vmem:[%s2 + $0x5b8] sm:$0xff]
  %v223 = vld [vmem:[%s2 + $0x5c0] sm:$0xff]
  %v224 = vld [vmem:[%s2 + $0x5c8] sm:$0xff]
  %v225 = vld [vmem:[%s2 + $0x5d0] sm:$0xff]
  %v226 = vld [vmem:[%s2 + $0x5d8] sm:$0xff]
  %v227 = vld [vmem:[%s2 + $0x5e0] sm:$0xff]
  %v228 = vld [vmem:[%s2 + $0x5e8] sm:$0xff]
  %v229 = vld [vmem:[%s2 + $0x5f0] sm:$0xff]
  %v230 = vld [vmem:[%s2 + $0x5f8] sm:$0xff]
  %v231 = vld [vmem:[%s2 + $0x600] sm:$0xff]
  %v232 = vld [vmem:[%s2 + $0x608] sm:$0xff]
  %v233 = vld [vmem:[%s2 + $0x610] sm:$0xff]
  %v234 = vld [vmem:[%s2 + $0x618] sm:$0xff]
  %v235 = vld [vmem:[%s2 + $0x620] sm:$0xff]
  %v236 = vld [vmem:[%s2 + $0x628] sm:$0xff]
  %v237 = vld [vmem:[%s2 + $0x630] sm:$0xff]
  %v238 = vld [vmem:[%s2 + $0x638] sm:$0xff]
  %v239 = vld [vmem:[%s2 + $0x640] sm:$0xff]
  %v240 = vld [vmem:[%s2 + $0x648] sm:$0xff]
  %v241 = vld [vmem:[%s2 + $0x650] sm:$0xff]
  %v242 = vld [vmem:[%s2 + $0x658] sm:$0xff]
  %v243 = vld [vmem:[%s2 + $0x660] sm:$0xff]
  %v244 = vld [vmem:[%s2 + $0x668] sm:$0xff]
  %v245 = vld [vmem:[%s2 + $0x670] sm:$0xff]
  %v246 = vld [vmem:[%s2 + $0x678] sm:$0xff]
  %v247 = vld [vmem:[%s2 + $0x680] sm:$0xff]
  %v248 = vld [vmem:[%s2 + $0x688] sm:$0xff]
  %v249 = vld [vmem:[%s2 + $0x690] sm:$0xff]
  %v250 = vld [vmem:[%s2 + $0x698] sm:$0xff]
  %v251 = vld [vmem:[%s2 + $0x6a0] sm:$0xff]
  %v252 = vld [vmem:[%s2 + $0x6a8] sm:$0xff]
  %v253 = vld [vmem:[%s2 + $0x6b0] sm:$0xff]
  %v254 = vld [vmem:[%s2 + $0x6b8] sm:$0xff]
  %v255 = vld [vmem:[%s2 + $0x6c0] sm:$0xff]
  %v256 = vld [vmem:[%s2 + $0x6c8] sm:$0xff]
  %v257 = vld [vmem:[%s2 + $0x6d0] sm:$0xff]
  %v258 = vld [vmem:[%s2 + $0x6d8] sm:$0xff]
  %v259 = vld [vmem:[%s2 + $0x6e0] sm:$0xff]
  %v260 = vld [vmem:[%s2 + $0x6e8] sm:$0xff]
  %v261 = vld [vmem:[%s2 + $0x6f0] sm:$0xff]
  %v262 = vld [vmem:[%s2 + $0x6f8] sm:$0xff]
  %v263 = vld [vmem:[%s2 + $0x700] sm:$0xff]
  %v264 = vld [vmem:[%s2 + $0x708] sm:$0xff]
  %v265 = vld [vmem:[%s2 + $0x710] sm:$0xff]
  %v266 = vld [vmem:[%s2 + $0x718] sm:$0xff]
  %v267 = vld [vmem:[%s2 + $0x720] sm:$0xff]
  %v268 = vld [vmem:[%s2 + $0x728] sm:$0xff]
  %v269 = vld [vmem:[%s2 + $0x730] sm:$0xff]
  %v270 = vld [vmem:[%s2 + $0x738] sm:$0xff]
  %v271 = vld [vmem:[%s2 + $0x740] sm:$0xff]
  %v272 = vld [vmem:[%s2 + $0x748] sm:$0xff]
  %v273 = vld [vmem:[%s2 + $0x750] sm:$0xff]
  %v274 = vld [vmem:[%s2 + $0x758] sm:$0xff]
  %v275 = vld [vmem:[%s2 + $0x760] sm:$0xff]
  %v276 = vld [vmem:[%s2 + $0x768] sm:$0xff]
  %v277 = vld [vmem:[%s2 + $0x770] sm:$0xff]
  %v278 = vld [vmem:[%s2 + $0x778] sm:$0xff]
  %v279 = vld [vmem:[%s2 + $0x780] sm:$0xff]
  %v280 = vld [vmem:[%s2 + $0x788] sm:$0xff]
  %v281 = vld [vmem:[%s2 + $0x790] sm:$0xff]
  %v282 = vld [vmem:[%s2 + $0x798] sm:$0xff]
  %v283 = vld [vmem:[%s2 + $0x7a0] sm:$0xff]
  %v284 = vld [vmem:[%s2 + $0x7a8] sm:$0xff]
  %v285 = vld [vmem:[%s2 + $0x7b0] sm:$0xff]
  %v286 = vld [vmem:[%s2 + $0x7b8] sm:$0xff]
  %v287 = vld [vmem:[%s2 + $0x7c0] sm:$0xff]
  %v288 = vld [vmem:[%s2 + $0x7c8] sm:$0xff]
  %v289 = vld [vmem:[%s2 + $0x7d0] sm:$0xff]
  %v290 = vld [vmem:[%s2 + $0x7d8] sm:$0xff]
  %v291 = vld [vmem:[%s2 + $0x7e0] sm:$0xff]
  %v292 = vld [vmem:[%s2 + $0x7e8] sm:$0xff]
  %v293 = vld [vmem:[%s2 + $0x7f0] sm:$0xff]
  %v294 = vld [vmem:[%s2 + $0x7f8] sm:$0xff]
  %v295 = vld [vmem:[%s2 + $0x800] sm:$0xff]
  %v296 = vld [vmem:[%s2 + $0x808] sm:$0xff]
  %v297 = vld [vmem:[%s2 + $0x810] sm:$0xff]
  %v298 = vld [vmem:[%s2 + $0x818] sm:$0xff]
  %v299 = vld [vmem:[%s2 + $0x820] sm:$0xff]
  %v300 = vld [vmem:[%s2 + $0x828] sm:$0xff]
  %v301 = vld [vmem:[%s2 + $0x830] sm:$0xff]
  %v302 = vld [vmem:[%s2 + $0x838] sm:$0xff]
  %v303 = vld [vmem:[%s2 + $0x840] sm:$0xff]
  %v304 = vld [vmem:[%s2 + $0x848] sm:$0xff]
  %v305 = vld [vmem:[%s2 + $0x850] sm:$0xff]
  %v306 = vld [vmem:[%s2 + $0x858] sm:$0xff]
  %v307 = vld [vmem:[%s2 + $0x860] sm:$0xff]
  %v308 = vld [vmem:[%s2 + $0x868] sm:$0xff]
  %v309 = vld [vmem:[%s2 + $0x870] sm:$0xff]
  %v310 = vld [vmem:[%s2 + $0x878] sm:$0xff]
  %v311 = vld [vmem:[%s2 + $0x880] sm:$0xff]
  %v312 = vld [vmem:[%s2 + $0x888] sm:$0xff]
  %v313 = vld [vmem:[%s2 + $0x890] sm:$0xff]
  %v314 = vld [vmem:[%s2 + $0x898] sm:$0xff]
  %v315 = vld [vmem:[%s2 + $0x8a0] sm:$0xff]
  %v316 = vld [vmem:[%s2 + $0x8a8] sm:$0xff]
  %v317 = vld [vmem:[%s2 + $0x8b0] sm:$0xff]
  %v318 = vld [vmem:[%s2 + $0x8b8] sm:$0xff]
  %v319 = vld [vmem:[%s2 + $0x8c0] sm:$0xff]
  %v320 = vld [vmem:[%s2 + $0x8c8] sm:$0xff]
  %v321 = vld [vmem:[%s2 + $0x8d0] sm:$0xff]
  %v322 = vld [vmem:[%s2 + $0x8d8] sm:$0xff]
  %v323 = vld [vmem:[%s2 + $0x8e0] sm:$0xff]
  %v324 = vld [vmem:[%s2 + $0x8e8] sm:$0xff]
  %v325 = vld [vmem:[%s2 + $0x8f0] sm:$0xff]
  %v326 = vld [vmem:[%s2 + $0x8f8] sm:$0xff]
  %327 = vmatprep.subr.mxu0 0.0
  %328 = vmatpush1.msra.mxu0 %v54
  %329 = vmatprep.subr.mxu0 0.0
  %330 = vmatpush1.msra.mxu0 %v53
  %331 = vmatprep.subr.mxu0 0.0
  %332 = vmatpush1.msra.mxu0 %v52
  %333 = vmatprep.subr.mxu0 0.0
  %334 = vmatpush1.msra.mxu0 %v51
  %335 = vmatprep.subr.mxu0 0.0
  %336 = vmatpush1.msra.mxu0 %v50
  %337 = vmatprep.subr.mxu0 0.0
  %338 = vmatpush1.msra.mxu0 %v49
  %339 = vmatprep.subr.mxu0 0.0
  %340 = vmatpush1.msra.mxu0 %v48
  %341 = vmatprep.subr.mxu0 0.0
  %342 = vmatpush1.msra.mxu0 %v47
  %343 = vmatprep.subr.mxu0 0.0
  %344 = vmatpush1.msra.mxu0 %v46
  %345 = vmatprep.subr.mxu0 0.0
  %346 = vmatpush1.msra.mxu0 %v45
  %347 = vmatprep.subr.mxu0 0.0
  %348 = vmatpush1.msra.mxu0 %v44
  %349 = vmatprep.subr.mxu0 0.0
  %350 = vmatpush1.msra.mxu0 %v43
  %351 = vmatprep.subr.mxu0 0.0
  %352 = vmatpush1.msra.mxu0 %v42
  %353 = vmatprep.subr.mxu0 0.0
  %354 = vmatpush1.msra.mxu0 %v41
  %355 = vmatprep.subr.mxu0 0.0
  %356 = vmatpush1.msra.mxu0 %v40
  %357 = vmatprep.subr.mxu0 0.0
  %358 = vmatpush1.msra.mxu0 %v39
  %359 = vmatprep.subr.mxu0 0.0
  %360 = vmatpush2.msra.mxu0 %v70
  %361 = vmatprep.subr.mxu0 0.0
  %362 = vmatpush2.msra.mxu0 %v69
  %363 = vmatprep.subr.mxu0 0.0
  %364 = vmatpush2.msra.mxu0 %v68
  %365 = vmatprep.subr.mxu0 0.0
  %366 = vmatpush2.msra.mxu0 %v67
  %367 = vmatprep.subr.mxu0 0.0
  %368 = vmatpush2.msra.mxu0 %v66
  %369 = vmatprep.subr.mxu0 0.0
  %370 = vmatpush2.msra.mxu0 %v65
  %371 = vmatprep.subr.mxu0 0.0
  %372 = vmatpush2.msra.mxu0 %v64
  %373 = vmatprep.subr.mxu0 0.0
  %374 = vmatpush2.msra.mxu0 %v63
  %375 = vmatprep.subr.mxu0 0.0
  %376 = vmatpush2.msra.mxu0 %v62
  %377 = vmatprep.subr.mxu0 0.0
  %378 = vmatpush2.msra.mxu0 %v61
  %379 = vmatprep.subr.mxu0 0.0
  %380 = vmatpush2.msra.mxu0 %v60
  %381 = vmatprep.subr.mxu0 0.0
  %382 = vmatpush2.msra.mxu0 %v59
  %383 = vmatprep.subr.mxu0 0.0
  %384 = vmatpush2.msra.mxu0 %v58
  %385 = vmatprep.subr.mxu0 0.0
  %386 = vmatpush2.msra.mxu0 %v57
  %387 = vmatprep.subr.mxu0 0.0
  %388 = vmatpush2.msra.mxu0 %v56
  %389 = vmatprep.subr.mxu0 0.0
  %390 = vmatpush2.msra.mxu0 %v55
  %391 = vmatprep.mubr.f32.mxu0 %v22
  %392 = vmatmul.mubr.f32.gmra.mxu0 %v21
  %v393 = vpop.f32.mrf.mxu0
  %v394 = vadd.f32 0.0, %v393
  %v395 = vpop.f32.mrf.mxu0
  %396 = vdwg.mxu0
  %397 = vmatprep.subr.mxu0 0.0
  %398 = vmatpush1.msra.mxu0 %v86
  %399 = vmatprep.subr.mxu0 0.0
  %400 = vmatpush1.msra.mxu0 %v85
  %401 = vmatprep.subr.mxu0 0.0
  %402 = vmatpush1.msra.mxu0 %v84
  %403 = vmatprep.subr.mxu0 0.0
  %404 = vmatpush1.msra.mxu0 %v83
  %405 = vmatprep.subr.mxu0 0.0
  %406 = vmatpush1.msra.mxu0 %v82
  %407 = vmatprep.subr.mxu0 0.0
  %408 = vmatpush1.msra.mxu0 %v81
  %409 = vmatprep.subr.mxu0 0.0
  %410 = vmatpush1.msra.mxu0 %v80
  %411 = vmatprep.subr.mxu0 0.0
  %412 = vmatpush1.msra.mxu0 %v79
  %413 = vmatprep.subr.mxu0 0.0
  %414 = vmatpush1.msra.mxu0 %v78
  %415 = vmatprep.subr.mxu0 0.0
  %416 = vmatpush1.msra.mxu0 %v77
  %417 = vmatprep.subr.mxu0 0.0
  %418 = vmatpush1.msra.mxu0 %v76
  %419 = vmatprep.subr.mxu0 0.0
  %420 = vmatpush1.msra.mxu0 %v75
  %421 = vmatprep.subr.mxu0 0.0
  %422 = vmatpush1.msra.mxu0 %v74
  %423 = vmatprep.subr.mxu0 0.0
  %424 = vmatpush1.msra.mxu0 %v73
  %425 = vmatprep.subr.mxu0 0.0
  %426 = vmatpush1.msra.mxu0 %v72
  %427 = vmatprep.subr.mxu0 0.0
  %428 = vmatpush1.msra.mxu0 %v71
  %429 = vmatprep.subr.mxu0 0.0
  %430 = vmatpush2.msra.mxu0 %v102
  %431 = vmatprep.subr.mxu0 0.0
  %432 = vmatpush2.msra.mxu0 %v101
  %433 = vmatprep.subr.mxu0 0.0
  %434 = vmatpush2.msra.mxu0 %v100
  %435 = vmatprep.subr.mxu0 0.0
  %436 = vmatpush2.msra.mxu0 %v99
  %437 = vmatprep.subr.mxu0 0.0
  %438 = vmatpush2.msra.mxu0 %v98
  %439 = vmatprep.subr.mxu0 0.0
  %440 = vmatpush2.msra.mxu0 %v97
  %441 = vmatprep.subr.mxu0 0.0
  %442 = vmatpush2.msra.mxu0 %v96
  %443 = vmatprep.subr.mxu0 0.0
  %444 = vmatpush2.msra.mxu0 %v95
  %445 = vmatprep.subr.mxu0 0.0
  %446 = vmatpush2.msra.mxu0 %v94
  %447 = vmatprep.subr.mxu0 0.0
  %448 = vmatpush2.msra.mxu0 %v93
  %449 = vmatprep.subr.mxu0 0.0
  %450 = vmatpush2.msra.mxu0 %v92
  %451 = vmatprep.subr.mxu0 0.0
  %452 = vmatpush2.msra.mxu0 %v91
  %453 = vmatprep.subr.mxu0 0.0
  %454 = vmatpush2.msra.mxu0 %v90
  %455 = vmatprep.subr.mxu0 0.0
  %456 = vmatpush2.msra.mxu0 %v89
  %457 = vmatprep.subr.mxu0 0.0
  %458 = vmatpush2.msra.mxu0 %v88
  %459 = vmatprep.subr.mxu0 0.0
  %460 = vmatpush2.msra.mxu0 %v87
  %461 = vmatprep.mubr.f32.mxu0 %v24
  %462 = vmatmul.mubr.f32.gmra.mxu0 %v23
  %v463 = vpop.f32.mrf.mxu0
  %v464 = vadd.f32 %v394, %v463
  %v465 = vpop.f32.mrf.mxu0
  %466 = vdwg.mxu0
  %467 = vmatprep.subr.mxu0 0.0
  %468 = vmatpush1.msra.mxu0 %v118
  %469 = vmatprep.subr.mxu0 0.0
  %470 = vmatpush1.msra.mxu0 %v117
  %471 = vmatprep.subr.mxu0 0.0
  %472 = vmatpush1.msra.mxu0 %v116
  %473 = vmatprep.subr.mxu0 0.0
  %474 = vmatpush1.msra.mxu0 %v115
  %475 = vmatprep.subr.mxu0 0.0
  %476 = vmatpush1.msra.mxu0 %v114
  %477 = vmatprep.subr.mxu0 0.0
  %478 = vmatpush1.msra.mxu0 %v113
  %479 = vmatprep.subr.mxu0 0.0
  %480 = vmatpush1.msra.mxu0 %v112
  %481 = vmatprep.subr.mxu0 0.0
  %482 = vmatpush1.msra.mxu0 %v111
  %483 = vmatprep.subr.mxu0 0.0
  %484 = vmatpush1.msra.mxu0 %v110
  %485 = vmatprep.subr.mxu0 0.0
  %486 = vmatpush1.msra.mxu0 %v109
  %487 = vmatprep.subr.mxu0 0.0
  %488 = vmatpush1.msra.mxu0 %v108
  %489 = vmatprep.subr.mxu0 0.0
  %490 = vmatpush1.msra.mxu0 %v107
  %491 = vmatprep.subr.mxu0 0.0
  %492 = vmatpush1.msra.mxu0 %v106
  %493 = vmatprep.subr.mxu0 0.0
  %494 = vmatpush1.msra.mxu0 %v105
  %495 = vmatprep.subr.mxu0 0.0
  %496 = vmatpush1.msra.mxu0 %v104
  %497 = vmatprep.subr.mxu0 0.0
  %498 = vmatpush1.msra.mxu0 %v103
  %499 = vmatprep.subr.mxu0 0.0
  %500 = vmatpush2.msra.mxu0 %v134
  %501 = vmatprep.subr.mxu0 0.0
  %502 = vmatpush2.msra.mxu0 %v133
  %503 = vmatprep.subr.mxu0 0.0
  %504 = vmatpush2.msra.mxu0 %v132
  %505 = vmatprep.subr.mxu0 0.0
  %506 = vmatpush2.msra.mxu0 %v131
  %507 = vmatprep.subr.mxu0 0.0
  %508 = vmatpush2.msra.mxu0 %v130
  %509 = vmatprep.subr.mxu0 0.0
  %510 = vmatpush2.msra.mxu0 %v129
  %511 = vmatprep.subr.mxu0 0.0
  %512 = vmatpush2.msra.mxu0 %v128
  %513 = vmatprep.subr.mxu0 0.0
  %514 = vmatpush2.msra.mxu0 %v127
  %515 = vmatprep.subr.mxu0 0.0
  %516 = vmatpush2.msra.mxu0 %v126
  %517 = vmatprep.subr.mxu0 0.0
  %518 = vmatpush2.msra.mxu0 %v125
  %519 = vmatprep.subr.mxu0 0.0
  %520 = vmatpush2.msra.mxu0 %v124
  %521 = vmatprep.subr.mxu0 0.0
  %522 = vmatpush2.msra.mxu0 %v123
  %523 = vmatprep.subr.mxu0 0.0
  %524 = vmatpush2.msra.mxu0 %v122
  %525 = vmatprep.subr.mxu0 0.0
  %526 = vmatpush2.msra.mxu0 %v121
  %527 = vmatprep.subr.mxu0 0.0
  %528 = vmatpush2.msra.mxu0 %v120
  %529 = vmatprep.subr.mxu0 0.0
  %530 = vmatpush2.msra.mxu0 %v119
  %531 = vmatprep.mubr.f32.mxu0 %v26
  %532 = vmatmul.mubr.f32.gmra.mxu0 %v25
  %v533 = vpop.f32.mrf.mxu0
  %v534 = vadd.f32 %v464, %v533
  %v535 = vpop.f32.mrf.mxu0
  %536 = vdwg.mxu0
  %537 = vmatprep.subr.mxu0 0.0
  %538 = vmatpush1.msra.mxu0 %v150
  %539 = vmatprep.subr.mxu0 0.0
  %540 = vmatpush1.msra.mxu0 %v149
  %541 = vmatprep.subr.mxu0 0.0
  %542 = vmatpush1.msra.mxu0 %v148
  %543 = vmatprep.subr.mxu0 0.0
  %544 = vmatpush1.msra.mxu0 %v147
  %545 = vmatprep.subr.mxu0 0.0
  %546 = vmatpush1.msra.mxu0 %v146
  %547 = vmatprep.subr.mxu0 0.0
  %548 = vmatpush1.msra.mxu0 %v145
  %549 = vmatprep.subr.mxu0 0.0
  %550 = vmatpush1.msra.mxu0 %v144
  %551 = vmatprep.subr.mxu0 0.0
  %552 = vmatpush1.msra.mxu0 %v143
  %553 = vmatprep.subr.mxu0 0.0
  %554 = vmatpush1.msra.mxu0 %v142
  %555 = vmatprep.subr.mxu0 0.0
  %556 = vmatpush1.msra.mxu0 %v141
  %557 = vmatprep.subr.mxu0 0.0
  %558 = vmatpush1.msra.mxu0 %v140
  %559 = vmatprep.subr.mxu0 0.0
  %560 = vmatpush1.msra.mxu0 %v139
  %561 = vmatprep.subr.mxu0 0.0
  %562 = vmatpush1.msra.mxu0 %v138
  %563 = vmatprep.subr.mxu0 0.0
  %564 = vmatpush1.msra.mxu0 %v137
  %565 = vmatprep.subr.mxu0 0.0
  %566 = vmatpush1.msra.mxu0 %v136
  %567 = vmatprep.subr.mxu0 0.0
  %568 = vmatpush1.msra.mxu0 %v135
  %569 = vmatprep.subr.mxu0 0.0
  %570 = vmatpush2.msra.mxu0 %v166
  %571 = vmatprep.subr.mxu0 0.0
  %572 = vmatpush2.msra.mxu0 %v165
  %573 = vmatprep.subr.mxu0 0.0
  %574 = vmatpush2.msra.mxu0 %v164
  %575 = vmatprep.subr.mxu0 0.0
  %576 = vmatpush2.msra.mxu0 %v163
  %577 = vmatprep.subr.mxu0 0.0
  %578 = vmatpush2.msra.mxu0 %v162
  %579 = vmatprep.subr.mxu0 0.0
  %580 = vmatpush2.msra.mxu0 %v161
  %581 = vmatprep.subr.mxu0 0.0
  %582 = vmatpush2.msra.mxu0 %v160
  %583 = vmatprep.subr.mxu0 0.0
  %584 = vmatpush2.msra.mxu0 %v159
  %585 = vmatprep.subr.mxu0 0.0
  %586 = vmatpush2.msra.mxu0 %v158
  %587 = vmatprep.subr.mxu0 0.0
  %588 = vmatpush2.msra.mxu0 %v157
  %589 = vmatprep.subr.mxu0 0.0
  %590 = vmatpush2.msra.mxu0 %v156
  %591 = vmatprep.subr.mxu0 0.0
  %592 = vmatpush2.msra.mxu0 %v155
  %593 = vmatprep.subr.mxu0 0.0
  %594 = vmatpush2.msra.mxu0 %v154
  %595 = vmatprep.subr.mxu0 0.0
  %596 = vmatpush2.msra.mxu0 %v153
  %597 = vmatprep.subr.mxu0 0.0
  %598 = vmatpush2.msra.mxu0 %v152
  %599 = vmatprep.subr.mxu0 0.0
  %600 = vmatpush2.msra.mxu0 %v151
  %601 = vmatprep.mubr.f32.mxu0 %v28
  %602 = vmatmul.mubr.f32.gmra.mxu0 %v27
  %v603 = vpop.f32.mrf.mxu0
  %v604 = vadd.f32 %v534, %v603
  %v605 = vpop.f32.mrf.mxu0
  %606 = vdwg.mxu0
  %607 = vmatprep.subr.mxu0 0.0
  %608 = vmatpush1.msra.mxu0 %v182
  %609 = vmatprep.subr.mxu0 0.0
  %610 = vmatpush1.msra.mxu0 %v181
  %611 = vmatprep.subr.mxu0 0.0
  %612 = vmatpush1.msra.mxu0 %v180
  %613 = vmatprep.subr.mxu0 0.0
  %614 = vmatpush1.msra.mxu0 %v179
  %615 = vmatprep.subr.mxu0 0.0
  %616 = vmatpush1.msra.mxu0 %v178
  %617 = vmatprep.subr.mxu0 0.0
  %618 = vmatpush1.msra.mxu0 %v177
  %619 = vmatprep.subr.mxu0 0.0
  %620 = vmatpush1.msra.mxu0 %v176
  %621 = vmatprep.subr.mxu0 0.0
  %622 = vmatpush1.msra.mxu0 %v175
  %623 = vmatprep.subr.mxu0 0.0
  %624 = vmatpush1.msra.mxu0 %v174
  %625 = vmatprep.subr.mxu0 0.0
  %626 = vmatpush1.msra.mxu0 %v173
  %627 = vmatprep.subr.mxu0 0.0
  %628 = vmatpush1.msra.mxu0 %v172
  %629 = vmatprep.subr.mxu0 0.0
  %630 = vmatpush1.msra.mxu0 %v171
  %631 = vmatprep.subr.mxu0 0.0
  %632 = vmatpush1.msra.mxu0 %v170
  %633 = vmatprep.subr.mxu0 0.0
  %634 = vmatpush1.msra.mxu0 %v169
  %635 = vmatprep.subr.mxu0 0.0
  %636 = vmatpush1.msra.mxu0 %v168
  %637 = vmatprep.subr.mxu0 0.0
  %638 = vmatpush1.msra.mxu0 %v167
  %639 = vmatprep.subr.mxu0 0.0
  %640 = vmatpush2.msra.mxu0 %v198
  %641 = vmatprep.subr.mxu0 0.0
  %642 = vmatpush2.msra.mxu0 %v197
  %643 = vmatprep.subr.mxu0 0.0
  %644 = vmatpush2.msra.mxu0 %v196
  %645 = vmatprep.subr.mxu0 0.0
  %646 = vmatpush2.msra.mxu0 %v195
  %647 = vmatprep.subr.mxu0 0.0
  %648 = vmatpush2.msra.mxu0 %v194
  %649 = vmatprep.subr.mxu0 0.0
  %650 = vmatpush2.msra.mxu0 %v193
  %651 = vmatprep.subr.mxu0 0.0
  %652 = vmatpush2.msra.mxu0 %v192
  %653 = vmatprep.subr.mxu0 0.0
  %654 = vmatpush2.msra.mxu0 %v191
  %655 = vmatprep.subr.mxu0 0.0
  %656 = vmatpush2.msra.mxu0 %v190
  %657 = vmatprep.subr.mxu0 0.0
  %658 = vmatpush2.msra.mxu0 %v189
  %659 = vmatprep.subr.mxu0 0.0
  %660 = vmatpush2.msra.mxu0 %v188
  %661 = vmatprep.subr.mxu0 0.0
  %662 = vmatpush2.msra.mxu0 %v187
  %663 = vmatprep.subr.mxu0 0.0
  %664 = vmatpush2.msra.mxu0 %v186
  %665 = vmatprep.subr.mxu0 0.0
  %666 = vmatpush2.msra.mxu0 %v185
  %667 = vmatprep.subr.mxu0 0.0
  %668 = vmatpush2.msra.mxu0 %v184
  %669 = vmatprep.subr.mxu0 0.0
  %670 = vmatpush2.msra.mxu0 %v183
  %671 = vmatprep.mubr.f32.mxu0 %v30
  %672 = vmatmul.mubr.f32.gmra.mxu0 %v29
  %v673 = vpop.f32.mrf.mxu0
  %v674 = vadd.f32 %v604, %v673
  %v675 = vpop.f32.mrf.mxu0
  %676 = vdwg.mxu0
  %677 = vmatprep.subr.mxu0 0.0
  %678 = vmatpush1.msra.mxu0 %v214
  %679 = vmatprep.subr.mxu0 0.0
  %680 = vmatpush1.msra.mxu0 %v213
  %681 = vmatprep.subr.mxu0 0.0
  %682 = vmatpush1.msra.mxu0 %v212
  %683 = vmatprep.subr.mxu0 0.0
  %684 = vmatpush1.msra.mxu0 %v211
  %685 = vmatprep.subr.mxu0 0.0
  %686 = vmatpush1.msra.mxu0 %v210
  %687 = vmatprep.subr.mxu0 0.0
  %688 = vmatpush1.msra.mxu0 %v209
  %689 = vmatprep.subr.mxu0 0.0
  %690 = vmatpush1.msra.mxu0 %v208
  %691 = vmatprep.subr.mxu0 0.0
  %692 = vmatpush1.msra.mxu0 %v207
  %693 = vmatprep.subr.mxu0 0.0
  %694 = vmatpush1.msra.mxu0 %v206
  %695 = vmatprep.subr.mxu0 0.0
  %696 = vmatpush1.msra.mxu0 %v205
  %697 = vmatprep.subr.mxu0 0.0
  %698 = vmatpush1.msra.mxu0 %v204
  %699 = vmatprep.subr.mxu0 0.0
  %700 = vmatpush1.msra.mxu0 %v203
  %701 = vmatprep.subr.mxu0 0.0
  %702 = vmatpush1.msra.mxu0 %v202
  %703 = vmatprep.subr.mxu0 0.0
  %704 = vmatpush1.msra.mxu0 %v201
  %705 = vmatprep.subr.mxu0 0.0
  %706 = vmatpush1.msra.mxu0 %v200
  %707 = vmatprep.subr.mxu0 0.0
  %708 = vmatpush1.msra.mxu0 %v199
  %709 = vmatprep.subr.mxu0 0.0
  %710 = vmatpush2.msra.mxu0 %v230
  %711 = vmatprep.subr.mxu0 0.0
  %712 = vmatpush2.msra.mxu0 %v229
  %713 = vmatprep.subr.mxu0 0.0
  %714 = vmatpush2.msra.mxu0 %v228
  %715 = vmatprep.subr.mxu0 0.0
  %716 = vmatpush2.msra.mxu0 %v227
  %717 = vmatprep.subr.mxu0 0.0
  %718 = vmatpush2.msra.mxu0 %v226
  %719 = vmatprep.subr.mxu0 0.0
  %720 = vmatpush2.msra.mxu0 %v225
  %721 = vmatprep.subr.mxu0 0.0
  %722 = vmatpush2.msra.mxu0 %v224
  %723 = vmatprep.subr.mxu0 0.0
  %724 = vmatpush2.msra.mxu0 %v223
  %725 = vmatprep.subr.mxu0 0.0
  %726 = vmatpush2.msra.mxu0 %v222
  %727 = vmatprep.subr.mxu0 0.0
  %728 = vmatpush2.msra.mxu0 %v221
  %729 = vmatprep.subr.mxu0 0.0
  %730 = vmatpush2.msra.mxu0 %v220
  %731 = vmatprep.subr.mxu0 0.0
  %732 = vmatpush2.msra.mxu0 %v219
  %733 = vmatprep.subr.mxu0 0.0
  %734 = vmatpush2.msra.mxu0 %v218
  %735 = vmatprep.subr.mxu0 0.0
  %736 = vmatpush2.msra.mxu0 %v217
  %737 = vmatprep.subr.mxu0 0.0
  %738 = vmatpush2.msra.mxu0 %v216
  %739 = vmatprep.subr.mxu0 0.0
  %740 = vmatpush2.msra.mxu0 %v215
  %741 = vmatprep.mubr.f32.mxu0 %v32
  %742 = vmatmul.mubr.f32.gmra.mxu0 %v31
  %v743 = vpop.f32.mrf.mxu0
  %v744 = vadd.f32 %v674, %v743
  %v745 = vpop.f32.mrf.mxu0
  %746 = vdwg.mxu0
  %747 = vmatprep.subr.mxu0 0.0
  %748 = vmatpush1.msra.mxu0 %v246
  %749 = vmatprep.subr.mxu0 0.0
  %750 = vmatpush1.msra.mxu0 %v245
  %751 = vmatprep.subr.mxu0 0.0
  %752 = vmatpush1.msra.mxu0 %v244
  %753 = vmatprep.subr.mxu0 0.0
  %754 = vmatpush1.msra.mxu0 %v243
  %755 = vmatprep.subr.mxu0 0.0
  %756 = vmatpush1.msra.mxu0 %v242
  %757 = vmatprep.subr.mxu0 0.0
  %758 = vmatpush1.msra.mxu0 %v241
  %759 = vmatprep.subr.mxu0 0.0
  %760 = vmatpush1.msra.mxu0 %v240
  %761 = vmatprep.subr.mxu0 0.0
  %762 = vmatpush1.msra.mxu0 %v239
  %763 = vmatprep.subr.mxu0 0.0
  %764 = vmatpush1.msra.mxu0 %v238
  %765 = vmatprep.subr.mxu0 0.0
  %766 = vmatpush1.msra.mxu0 %v237
  %767 = vmatprep.subr.mxu0 0.0
  %768 = vmatpush1.msra.mxu0 %v236
  %769 = vmatprep.subr.mxu0 0.0
  %770 = vmatpush1.msra.mxu0 %v235
  %771 = vmatprep.subr.mxu0 0.0
  %772 = vmatpush1.msra.mxu0 %v234
  %773 = vmatprep.subr.mxu0 0.0
  %774 = vmatpush1.msra.mxu0 %v233
  %775 = vmatprep.subr.mxu0 0.0
  %776 = vmatpush1.msra.mxu0 %v232
  %777 = vmatprep.subr.mxu0 0.0
  %778 = vmatpush1.msra.mxu0 %v231
  %779 = vmatprep.subr.mxu0 0.0
  %780 = vmatpush2.msra.mxu0 %v262
  %781 = vmatprep.subr.mxu0 0.0
  %782 = vmatpush2.msra.mxu0 %v261
  %783 = vmatprep.subr.mxu0 0.0
  %784 = vmatpush2.msra.mxu0 %v260
  %785 = vmatprep.subr.mxu0 0.0
  %786 = vmatpush2.msra.mxu0 %v259
  %787 = vmatprep.subr.mxu0 0.0
  %788 = vmatpush2.msra.mxu0 %v258
  %789 = vmatprep.subr.mxu0 0.0
  %790 = vmatpush2.msra.mxu0 %v257
  %791 = vmatprep.subr.mxu0 0.0
  %792 = vmatpush2.msra.mxu0 %v256
  %793 = vmatprep.subr.mxu0 0.0
  %794 = vmatpush2.msra.mxu0 %v255
  %795 = vmatprep.subr.mxu0 0.0
  %796 = vmatpush2.msra.mxu0 %v254
  %797 = vmatprep.subr.mxu0 0.0
  %798 = vmatpush2.msra.mxu0 %v253
  %799 = vmatprep.subr.mxu0 0.0
  %800 = vmatpush2.msra.mxu0 %v252
  %801 = vmatprep.subr.mxu0 0.0
  %802 = vmatpush2.msra.mxu0 %v251
  %803 = vmatprep.subr.mxu0 0.0
  %804 = vmatpush2.msra.mxu0 %v250
  %805 = vmatprep.subr.mxu0 0.0
  %806 = vmatpush2.msra.mxu0 %v249
  %807 = vmatprep.subr.mxu0 0.0
  %808 = vmatpush2.msra.mxu0 %v248
  %809 = vmatprep.subr.mxu0 0.0
  %810 = vmatpush2.msra.mxu0 %v247
  %811 = vmatprep.mubr.f32.mxu0 %v34
  %812 = vmatmul.mubr.f32.gmra.mxu0 %v33
  %v813 = vpop.f32.mrf.mxu0
  %v814 = vadd.f32 %v744, %v813
  %v815 = vpop.f32.mrf.mxu0
  %816 = vdwg.mxu0
  %817 = vmatprep.subr.mxu0 0.0
  %818 = vmatpush1.msra.mxu0 %v278
  %819 = vmatprep.subr.mxu0 0.0
  %820 = vmatpush1.msra.mxu0 %v277
  %821 = vmatprep.subr.mxu0 0.0
  %822 = vmatpush1.msra.mxu0 %v276
  %823 = vmatprep.subr.mxu0 0.0
  %824 = vmatpush1.msra.mxu0 %v275
  %825 = vmatprep.subr.mxu0 0.0
  %826 = vmatpush1.msra.mxu0 %v274
  %827 = vmatprep.subr.mxu0 0.0
  %828 = vmatpush1.msra.mxu0 %v273
  %829 = vmatprep.subr.mxu0 0.0
  %830 = vmatpush1.msra.mxu0 %v272
  %831 = vmatprep.subr.mxu0 0.0
  %832 = vmatpush1.msra.mxu0 %v271
  %833 = vmatprep.subr.mxu0 0.0
  %834 = vmatpush1.msra.mxu0 %v270
  %835 = vmatprep.subr.mxu0 0.0
  %836 = vmatpush1.msra.mxu0 %v269
  %837 = vmatprep.subr.mxu0 0.0
  %838 = vmatpush1.msra.mxu0 %v268
  %839 = vmatprep.subr.mxu0 0.0
  %840 = vmatpush1.msra.mxu0 %v267
  %841 = vmatprep.subr.mxu0 0.0
  %842 = vmatpush1.msra.mxu0 %v266
  %843 = vmatprep.subr.mxu0 0.0
  %844 = vmatpush1.msra.mxu0 %v265
  %845 = vmatprep.subr.mxu0 0.0
  %846 = vmatpush1.msra.mxu0 %v264
  %847 = vmatprep.subr.mxu0 0.0
  %848 = vmatpush1.msra.mxu0 %v263
  %849 = vmatprep.subr.mxu0 0.0
  %850 = vmatpush2.msra.mxu0 %v294
  %851 = vmatprep.subr.mxu0 0.0
  %852 = vmatpush2.msra.mxu0 %v293
  %853 = vmatprep.subr.mxu0 0.0
  %854 = vmatpush2.msra.mxu0 %v292
  %855 = vmatprep.subr.mxu0 0.0
  %856 = vmatpush2.msra.mxu0 %v291
  %857 = vmatprep.subr.mxu0 0.0
  %858 = vmatpush2.msra.mxu0 %v290
  %859 = vmatprep.subr.mxu0 0.0
  %860 = vmatpush2.msra.mxu0 %v289
  %861 = vmatprep.subr.mxu0 0.0
  %862 = vmatpush2.msra.mxu0 %v288
  %863 = vmatprep.subr.mxu0 0.0
  %864 = vmatpush2.msra.mxu0 %v287
  %865 = vmatprep.subr.mxu0 0.0
  %866 = vmatpush2.msra.mxu0 %v286
  %867 = vmatprep.subr.mxu0 0.0
  %868 = vmatpush2.msra.mxu0 %v285
  %869 = vmatprep.subr.mxu0 0.0
  %870 = vmatpush2.msra.mxu0 %v284
  %871 = vmatprep.subr.mxu0 0.0
  %872 = vmatpush2.msra.mxu0 %v283
  %873 = vmatprep.subr.mxu0 0.0
  %874 = vmatpush2.msra.mxu0 %v282
  %875 = vmatprep.subr.mxu0 0.0
  %876 = vmatpush2.msra.mxu0 %v281
  %877 = vmatprep.subr.mxu0 0.0
  %878 = vmatpush2.msra.mxu0 %v280
  %879 = vmatprep.subr.mxu0 0.0
  %880 = vmatpush2.msra.mxu0 %v279
  %881 = vmatprep.mubr.f32.mxu0 %v36
  %882 = vmatmul.mubr.f32.gmra.mxu0 %v35
  %v883 = vpop.f32.mrf.mxu0
  %v884 = vadd.f32 %v814, %v883
  %v885 = vpop.f32.mrf.mxu0
  %886 = vdwg.mxu0
  %887 = vmatprep.subr.mxu0 0.0
  %888 = vmatpush1.msra.mxu0 %v310
  %889 = vmatprep.subr.mxu0 0.0
  %890 = vmatpush1.msra.mxu0 %v309
  %891 = vmatprep.subr.mxu0 0.0
  %892 = vmatpush1.msra.mxu0 %v308
  %893 = vmatprep.subr.mxu0 0.0
  %894 = vmatpush1.msra.mxu0 %v307
  %895 = vmatprep.subr.mxu0 0.0
  %896 = vmatpush1.msra.mxu0 %v306
  %897 = vmatprep.subr.mxu0 0.0
  %898 = vmatpush1.msra.mxu0 %v305
  %899 = vmatprep.subr.mxu0 0.0
  %900 = vmatpush1.msra.mxu0 %v304
  %901 = vmatprep.subr.mxu0 0.0
  %902 = vmatpush1.msra.mxu0 %v303
  %903 = vmatprep.subr.mxu0 0.0
  %904 = vmatpush1.msra.mxu0 %v302
  %905 = vmatprep.subr.mxu0 0.0
  %906 = vmatpush1.msra.mxu0 %v301
  %907 = vmatprep.subr.mxu0 0.0
  %908 = vmatpush1.msra.mxu0 %v300
  %909 = vmatprep.subr.mxu0 0.0
  %910 = vmatpush1.msra.mxu0 %v299
  %911 = vmatprep.subr.mxu0 0.0
  %912 = vmatpush1.msra.mxu0 %v298
  %913 = vmatprep.subr.mxu0 0.0
  %914 = vmatpush1.msra.mxu0 %v297
  %915 = vmatprep.subr.mxu0 0.0
  %916 = vmatpush1.msra.mxu0 %v296
  %917 = vmatprep.subr.mxu0 0.0
  %918 = vmatpush1.msra.mxu0 %v295
  %919 = vmatprep.subr.mxu0 0.0
  %920 = vmatpush2.msra.mxu0 %v326
  %921 = vmatprep.subr.mxu0 0.0
  %922 = vmatpush2.msra.mxu0 %v325
  %923 = vmatprep.subr.mxu0 0.0
  %924 = vmatpush2.msra.mxu0 %v324
  %925 = vmatprep.subr.mxu0 0.0
  %926 = vmatpush2.msra.mxu0 %v323
  %927 = vmatprep.subr.mxu0 0.0
  %928 = vmatpush2.msra.mxu0 %v322
  %929 = vmatprep.subr.mxu0 0.0
  %930 = vmatpush2.msra.mxu0 %v321
  %931 = vmatprep.subr.mxu0 0.0
  %932 = vmatpush2.msra.mxu0 %v320
  %933 = vmatprep.subr.mxu0 0.0
  %934 = vmatpush2.msra.mxu0 %v319
  %935 = vmatprep.subr.mxu0 0.0
  %936 = vmatpush2.msra.mxu0 %v318
  %937 = vmatprep.subr.mxu0 0.0
  %938 = vmatpush2.msra.mxu0 %v317
  %939 = vmatprep.subr.mxu0 0.0
  %940 = vmatpush2.msra.mxu0 %v316
  %941 = vmatprep.subr.mxu0 0.0
  %942 = vmatpush2.msra.mxu0 %v315
  %943 = vmatprep.subr.mxu0 0.0
  %944 = vmatpush2.msra.mxu0 %v314
  %945 = vmatprep.subr.mxu0 0.0
  %946 = vmatpush2.msra.mxu0 %v313
  %947 = vmatprep.subr.mxu0 0.0
  %948 = vmatpush2.msra.mxu0 %v312
  %949 = vmatprep.subr.mxu0 0.0
  %950 = vmatpush2.msra.mxu0 %v311
  %951 = vmatprep.mubr.f32.mxu0 %v38
  %952 = vmatmul.mubr.f32.gmra.mxu0 %v37
  %v953 = vpop.f32.mrf.mxu0
  %v954 = vadd.f32 %v884, %v953
  %v955 = vpop.f32.mrf.mxu0
  %956 = vdwg.mxu0
  %s957 = sld [smem:[#allocation2]]
  %vm958 = vcmp.gt.f32.partialorder %v954, 0.0
  %v959 = vstv %s957
  %v960 = vmul.f32 %v959, %v954
  %v961 = vsel %vm958, %v954, %v960
  %v962 = vld [vmem:[%s3] sm:$0xff]
  %v963 = vld [vmem:[%s3 + $0x8] sm:$0xff]
  %v964 = vld [vmem:[%s3 + $0x10] sm:$0xff]
  %v965 = vld [vmem:[%s3 + $0x18] sm:$0xff]
  %v966 = vld [vmem:[%s3 + $0x20] sm:$0xff]
  %v967 = vld [vmem:[%s3 + $0x28] sm:$0xff]
  %v968 = vld [vmem:[%s3 + $0x30] sm:$0xff]
  %v969 = vld [vmem:[%s3 + $0x38] sm:$0xff]
  %v970 = vld [vmem:[%s3 + $0x40] sm:$0xff]
  %v971 = vld [vmem:[%s3 + $0x48] sm:$0xff]
  %v972 = vld [vmem:[%s3 + $0x50] sm:$0xff]
  %v973 = vld [vmem:[%s3 + $0x58] sm:$0xff]
  %v974 = vld [vmem:[%s3 + $0x60] sm:$0xff]
  %v975 = vld [vmem:[%s3 + $0x68] sm:$0xff]
  %v976 = vld [vmem:[%s3 + $0x70] sm:$0xff]
  %v977 = vld [vmem:[%s3 + $0x78] sm:$0xff]
  %978 = vmatprep.subr.mxu0 0.0
  %979 = vmatpush1.msra.mxu0 %v977
  %980 = vmatprep.subr.mxu0 0.0
  %981 = vmatpush1.msra.mxu0 %v976
  %982 = vmatprep.subr.mxu0 0.0
  %983 = vmatpush1.msra.mxu0 %v975
  %984 = vmatprep.subr.mxu0 0.0
  %985 = vmatpush1.msra.mxu0 %v974
  %986 = vmatprep.subr.mxu0 0.0
  %987 = vmatpush1.msra.mxu0 %v973
  %988 = vmatprep.subr.mxu0 0.0
  %989 = vmatpush1.msra.mxu0 %v972
  %990 = vmatprep.subr.mxu0 0.0
  %991 = vmatpush1.msra.mxu0 %v971
  %992 = vmatprep.subr.mxu0 0.0
  %993 = vmatpush1.msra.mxu0 %v970
  %994 = vmatprep.subr.mxu0 0.0
  %995 = vmatpush1.msra.mxu0 %v969
  %996 = vmatprep.subr.mxu0 0.0
  %997 = vmatpush1.msra.mxu0 %v968
  %998 = vmatprep.subr.mxu0 0.0
  %999 = vmatpush1.msra.mxu0 %v967
  %1000 = vmatprep.subr.mxu0 0.0
  %1001 = vmatpush1.msra.mxu0 %v966
  %1002 = vmatprep.subr.mxu0 0.0
  %1003 = vmatpush1.msra.mxu0 %v965
  %1004 = vmatprep.subr.mxu0 0.0
  %1005 = vmatpush1.msra.mxu0 %v964
  %1006 = vmatprep.subr.mxu0 0.0
  %1007 = vmatpush1.msra.mxu0 %v963
  %1008 = vmatprep.subr.mxu0 0.0
  %1009 = vmatpush1.msra.mxu0 %v962
  %1010 = vmatprep.subr.mxu0 0.0
  %1011 = vmatpush2.msra.mxu0 0.0
  %1012 = vmatprep.subr.mxu0 0.0
  %1013 = vmatpush2.msra.mxu0 0.0
  %1014 = vmatprep.subr.mxu0 0.0
  %1015 = vmatpush2.msra.mxu0 0.0
  %1016 = vmatprep.subr.mxu0 0.0
  %1017 = vmatpush2.msra.mxu0 0.0
  %1018 = vmatprep.subr.mxu0 0.0
  %1019 = vmatpush2.msra.mxu0 0.0
  %1020 = vmatprep.subr.mxu0 0.0
  %1021 = vmatpush2.msra.mxu0 0.0
  %1022 = vmatprep.subr.mxu0 0.0
  %1023 = vmatpush2.msra.mxu0 0.0
  %1024 = vmatprep.subr.mxu0 0.0
  %1025 = vmatpush2.msra.mxu0 0.0
  %1026 = vmatprep.subr.mxu0 0.0
  %1027 = vmatpush2.msra.mxu0 0.0
  %1028 = vmatprep.subr.mxu0 0.0
  %1029 = vmatpush2.msra.mxu0 0.0
  %1030 = vmatprep.subr.mxu0 0.0
  %1031 = vmatpush2.msra.mxu0 0.0
  %1032 = vmatprep.subr.mxu0 0.0
  %1033 = vmatpush2.msra.mxu0 0.0
  %1034 = vmatprep.subr.mxu0 0.0
  %1035 = vmatpush2.msra.mxu0 0.0
  %1036 = vmatprep.subr.mxu0 0.0
  %1037 = vmatpush2.msra.mxu0 0.0
  %1038 = vmatprep.subr.mxu0 0.0
  %1039 = vmatpush2.msra.mxu0 0.0
  %1040 = vmatprep.subr.mxu0 0.0
  %1041 = vmatpush2.msra.mxu0 0.0
  %1042 = vmatprep.mubr.f32.mxu0 0.0
  %1043 = vmatmul.mubr.f32.gmra.mxu0 %v961
  %v1044 = vpop.f32.mrf.mxu0
  %v1045 = vadd.f32 0.0, %v1044
  %v1046 = vpop.f32.mrf.mxu0
  %1047 = vdwg.mxu0
  %v1048 = vxor.u32 %v1045, 2147483648
  %v1049 = vmul.f32 %v1048, 1.442695
  %v1050 = vpow.pop %v1049
  %v1051 = vadd.f32 %v1050, 1.0
  %v1052 = vrcp.pop %v1051
  %v1053 = vmul.f32 1.0, %v1052
  %v1054 = vld [vmem:[%s4] sm:$0xff]
  %v1055 = vmul.f32 %v1054, %v1053
  %1056 = vst [vmem:[%s5] sm:$0xff] %v1055
  // Predicated region
  $region22: #{scm_forward.1} parent=0 // pred_check
    _
  $region23: #{scm_forward.1} parent=0 // pred_check_branch
    %1058 = sbr.rel (0) target = $region25
  $region24: #{scm_forward.1} parent=0 // pred_region
    _
  $region25: #{scm_forward.1} parent=0 // pred_fallthru
    _
  // Predicated region
  $region26: #{scm_forward.1} parent=0 // pred_check
    _
  $region27: #{scm_forward.1} parent=0 // pred_check_branch
    %1060 = sbr.rel (0) target = $region29
  $region28: #{scm_forward.1} parent=0 // pred_region
    _
  $region29: #{scm_forward.1} parent=0 // pred_fallthru
    _

</llo_original>
